<compile_context>
chip_gen: v7x
topology: tpu7x:2x2x1
jax: 0.10.0
libtpu: 0.0.40
codegen_flags: <defaults>
</compile_context>

<pallas_src>
import functools

import jax
import jax.numpy as jnp
from jax.experimental import pallas as pl
from jax.experimental.pallas import tpu as pltpu


def _round_up(x, m):
    return ((x + m - 1) // m) * m


def _dqn_v3_kernel(s0_ref, s1_ref,
                   w1_ref, b1_ref,
                   w2_ref, b2_ref,
                   w3_ref, b3_ref,
                   out_ref, x_ref, *, states_size):
    """Fused forward for one batch tile: concat + Linear/ReLU x2 + Linear."""
    S = states_size
    s0 = s0_ref[...]                       # (TB, S) f32
    s1 = s1_ref[...]                       # (TB, S) f32

    # Build x = cat([s0, |s1-s0|, s1], dim=1) in a bf16 VMEM scratch with three
    # lane-slice stores (no XLU relayout), then do ONE K=3S MXU dot instead of
    # three K=S dots: with K this small the kernel is vmatmul-push bound, so a
    # single dot cuts layer-1 pushes ~3x.
    x_ref[:, 0:S] = s0.astype(jnp.bfloat16)
    x_ref[:, S:2 * S] = jnp.abs(s1 - s0).astype(jnp.bfloat16)
    x_ref[:, 2 * S:3 * S] = s1.astype(jnp.bfloat16)

    h1 = jnp.dot(x_ref[...], w1_ref[...], preferred_element_type=jnp.float32)
    h1 = jnp.maximum(h1 + b1_ref[...], 0.0)          # bias/ReLU in f32

    h2 = jnp.dot(h1.astype(jnp.bfloat16), w2_ref[...],
                 preferred_element_type=jnp.float32) + b2_ref[...]
    h2 = jnp.maximum(h2, 0.0)

    out = jnp.dot(h2.astype(jnp.bfloat16), w3_ref[...],
                  preferred_element_type=jnp.float32) + b3_ref[...]
    out_ref[...] = out.astype(out_ref.dtype)


def prepare_params(params):
    """One-time weight prep (call once, outside the per-step forward):
      * bf16 weights (MXU-native), f32 biases,
      * hidden dims zero-padded 120->128, 30->32 for full-lane vregs and
        aligned bf16 sublane packing.  Exact: padded h1/h2 columns stay 0
        through ReLU and multiply against zero rows downstream."""
    w1, b1, w2, b2, w3, b3 = params
    in_dim, h1 = w1.shape
    h2 = w2.shape[1]
    a = w3.shape[1]
    h1p = _round_up(h1, 128)   # 120 -> 128
    h2p = _round_up(h2, 32)    # 30  -> 32

    w1p = jnp.zeros((in_dim, h1p), jnp.bfloat16).at[:, :h1].set(
        w1.astype(jnp.bfloat16))
    b1p = jnp.zeros((1, h1p), jnp.float32).at[:, :h1].set(b1.reshape(1, -1))
    w2p = jnp.zeros((h1p, h2p), jnp.bfloat16).at[:h1, :h2].set(
        w2.astype(jnp.bfloat16))
    b2p = jnp.zeros((1, h2p), jnp.float32).at[:, :h2].set(b2.reshape(1, -1))
    w3p = jnp.zeros((h2p, a), jnp.bfloat16).at[:h2, :].set(
        w3.astype(jnp.bfloat16))
    b3p = b3.reshape(1, -1).astype(jnp.float32)
    return (w1p, b1p, w2p, b2p, w3p, b3p)


def dqn_v3_forward(state_t, state_t_plus_1, prepared_params, *, tile_b=4096):
    """Batched forward. Batch axis is tiled over a 1-D parallel grid; weights
    stay resident in VMEM across grid steps (index_map -> (0, 0))."""
    w1, b1, w2, b2, w3, b3 = prepared_params
    B, S = state_t.shape
    K1, H1 = w1.shape
    H2 = w2.shape[1]
    A = w3.shape[1]
    assert K1 == 3 * S, "w1 must have 3*states_size input rows"

    # Batch tile: multiple of 8 sublanes; target >=4 grid steps so v7x's two
    # TensorCores both get work, capped at tile_b.  Per-step VMEM at tb=4096
    # is ~8 MiB (inputs + bf16 scratch + f32 h1/h2 + output), comfortably
    # inside the explicit 32 MiB limit below on every generation.
    tb = min(tile_b, max(8, _round_up(pl.cdiv(B, 4), 8)))
    grid = (pl.cdiv(B, tb),)

    kernel = functools.partial(_dqn_v3_kernel, states_size=S)

    return pl.pallas_call(
        kernel,
        out_shape=jax.ShapeDtypeStruct((B, A), jnp.float32),
        grid=grid,
        in_specs=[
            pl.BlockSpec((tb, S), lambda i: (i, 0)),       # state_t
            pl.BlockSpec((tb, S), lambda i: (i, 0)),       # state_t+1
            pl.BlockSpec((K1, H1), lambda i: (0, 0)),      # w1 (bf16, padded)
            pl.BlockSpec((1, H1), lambda i: (0, 0)),       # b1 (f32, padded)
            pl.BlockSpec((H1, H2), lambda i: (0, 0)),      # w2 (bf16, padded)
            pl.BlockSpec((1, H2), lambda i: (0, 0)),       # b2 (f32, padded)
            pl.BlockSpec((H2, A), lambda i: (0, 0)),       # w3 (bf16, padded K)
            pl.BlockSpec((1, A), lambda i: (0, 0)),        # b3 (f32)
        ],
        # Output block's last dim equals the full array dim (action_size), so
        # no 128-lane zero pad and no wrapper slice: ~32x less HBM writeback.
        out_specs=pl.BlockSpec((tb, A), lambda i: (i, 0)),
        scratch_shapes=[pltpu.VMEM((tb, 3 * S), jnp.bfloat16)],  # concat buf
        compiler_params=pltpu.CompilerParams(
            dimension_semantics=("parallel",),
            vmem_limit_bytes=32 * 1024 * 1024),   # v5e scoped default is 16 MiB
    )(state_t, state_t_plus_1, w1, b1, w2, b2, w3, b3)


def init_params(key, states_size, action_size):
    """Deterministic init mirroring nn.Linear shapes (weights stored transposed:
    (in, out) so the kernel can do x @ W). Biases kept 2-D (1, out)."""
    in_dim = states_size * 3
    dims = [(in_dim, 120), (120, 30), (30, action_size)]
    params = []
    for i, (fan_in, fan_out) in enumerate(dims):
        kw, kb, key = jax.random.split(jax.random.fold_in(key, i), 3)
        bound = 1.0 / jnp.sqrt(fan_in)
        w = jax.random.uniform(kw, (fan_in, fan_out), jnp.float32, -bound, bound)
        b = jax.random.uniform(kb, (1, fan_out), jnp.float32, -bound, bound)
        params.extend([w, b])
    return tuple(params)


def dqn_v3_reference(state_t, state_t_plus_1, params):
    """Plain-JAX f32 reference matching the PyTorch module semantics."""
    w1, b1, w2, b2, w3, b3 = params
    x = jnp.concatenate(
        [state_t, jnp.abs(state_t_plus_1 - state_t), state_t_plus_1], axis=1)
    h1 = jnp.maximum(x @ w1 + b1, 0.0)
    h2 = jnp.maximum(h1 @ w2 + b2, 0.0)
    return h2 @ w3 + b3


if __name__ == "__main__":
    states_size = 16
    action_size = 4
    batch = 8  # small demo batch; fills the 8 sublanes of a vreg

    key = jax.random.PRNGKey(0)
    k0, k1, kp = jax.random.split(key, 3)

    state_t = jax.random.normal(k0, (batch, states_size), jnp.float32)
    state_t_plus_1 = jax.random.normal(k1, (batch, states_size), jnp.float32)
    params = init_params(kp, states_size, action_size)

    # One-time weight prep (bf16 cast + padding) hoisted out of the forward.
    prepared = jax.block_until_ready(
        jax.tree_util.tree_map(jnp.asarray, prepare_params(params)))

    out = dqn_v3_forward(state_t, state_t_plus_1, prepared)
    out = jax.block_until_ready(out)

    ref = dqn_v3_reference(state_t, state_t_plus_1, params)
    assert out.shape == (batch, action_size)
    assert bool(jnp.all(jnp.isfinite(out))), "non-finite output"
    # bf16 weights/activations with f32 accumulation vs pure-f32 reference:
    # expected deviation is O(1e-3); 3e-2 tolerance leaves ample margin.
    assert jnp.allclose(out, ref, atol=3e-2, rtol=3e-2), "mismatch vs reference"

    print("KERNEL_OK")
</pallas_src>

<mosaic_0001>
module attributes {stable_mosaic.version = 11 : i64} {
  func.func @_dqn_v3_kernel(%arg0: i32, %arg1: memref<8x16xf32, #tpu.memory_space<vmem>>, %arg2: memref<8x16xf32, #tpu.memory_space<vmem>>, %arg3: memref<48x128xbf16, #tpu.memory_space<vmem>>, %arg4: memref<1x128xf32, #tpu.memory_space<vmem>>, %arg5: memref<128x32xbf16, #tpu.memory_space<vmem>>, %arg6: memref<1x32xf32, #tpu.memory_space<vmem>>, %arg7: memref<32x4xbf16, #tpu.memory_space<vmem>>, %arg8: memref<1x4xf32, #tpu.memory_space<vmem>>, %arg9: memref<8x4xf32, #tpu.memory_space<vmem>>, %arg10: memref<8x48xbf16, #tpu.memory_space<vmem>>) attributes {dimension_semantics = [#tpu.dimension_semantics<parallel>], iteration_bounds = array<i64: 1>, scalar_prefetch = 0 : i64, scratch_operands = 1 : i64, tpu.core_type = #tpu.core_type<tc>, window_params = [{transform_indices = @transform_0, window_bounds = array<i64: 8, 16>}, {transform_indices = @transform_1, window_bounds = array<i64: 8, 16>}, {pipeline_mode = #tpu.pipeline_mode<synchronous>, transform_indices = @transform_2, window_bounds = array<i64: 48, 128>}, {pipeline_mode = #tpu.pipeline_mode<synchronous>, transform_indices = @transform_3, window_bounds = array<i64: 1, 128>}, {pipeline_mode = #tpu.pipeline_mode<synchronous>, transform_indices = @transform_4, window_bounds = array<i64: 128, 32>}, {pipeline_mode = #tpu.pipeline_mode<synchronous>, transform_indices = @transform_5, window_bounds = array<i64: 1, 32>}, {pipeline_mode = #tpu.pipeline_mode<synchronous>, transform_indices = @transform_6, window_bounds = array<i64: 32, 4>}, {pipeline_mode = #tpu.pipeline_mode<synchronous>, transform_indices = @transform_7, window_bounds = array<i64: 1, 4>}, {transform_indices = @transform_8, window_bounds = array<i64: 8, 4>}]} {
    %c0 = arith.constant 0 : index
    %c0_0 = arith.constant 0 : index
    %0 = vector.load %arg1[%c0, %c0_0] : memref<8x16xf32, #tpu.memory_space<vmem>>, vector<8x16xf32>
    %c0_1 = arith.constant 0 : index
    %c0_2 = arith.constant 0 : index
    %1 = vector.load %arg2[%c0_1, %c0_2] : memref<8x16xf32, #tpu.memory_space<vmem>>, vector<8x16xf32>
    %2 = arith.truncf %0 : vector<8x16xf32> to vector<8x16xbf16>
    %c0_3 = arith.constant 0 : index
    %c0_4 = arith.constant 0 : index
    %3 = vector.load %arg10[%c0_3, %c0_4] : memref<8x48xbf16, #tpu.memory_space<vmem>>, vector<8x16xbf16>
    tpu.vector_store %arg10[%c0_3, %c0_4], %2 {strides = array<i32>} : memref<8x48xbf16, #tpu.memory_space<vmem>>, vector<8x16xbf16>,
    %4 = arith.subf %1, %0 : vector<8x16xf32>
    %5 = math.absf %4 : vector<8x16xf32>
    %6 = arith.truncf %5 : vector<8x16xf32> to vector<8x16xbf16>
    %c0_5 = arith.constant 0 : index
    %c16 = arith.constant 16 : index
    %7 = vector.load %arg10[%c0_5, %c16] : memref<8x48xbf16, #tpu.memory_space<vmem>>, vector<8x16xbf16>
    tpu.vector_store %arg10[%c0_5, %c16], %6 {strides = array<i32>} : memref<8x48xbf16, #tpu.memory_space<vmem>>, vector<8x16xbf16>,
    %8 = arith.truncf %1 : vector<8x16xf32> to vector<8x16xbf16>
    %c0_6 = arith.constant 0 : index
    %c32 = arith.constant 32 : index
    %9 = vector.load %arg10[%c0_6, %c32] : memref<8x48xbf16, #tpu.memory_space<vmem>>, vector<8x16xbf16>
    tpu.vector_store %arg10[%c0_6, %c32], %8 {strides = array<i32>} : memref<8x48xbf16, #tpu.memory_space<vmem>>, vector<8x16xbf16>,
    %c0_7 = arith.constant 0 : index
    %c0_8 = arith.constant 0 : index
    %10 = vector.load %arg10[%c0_7, %c0_8] : memref<8x48xbf16, #tpu.memory_space<vmem>>, vector<8x48xbf16>
    %c0_9 = arith.constant 0 : index
    %c0_10 = arith.constant 0 : index
    %11 = vector.load %arg3[%c0_9, %c0_10] : memref<48x128xbf16, #tpu.memory_space<vmem>>, vector<48x128xbf16>
    %cst = arith.constant dense<0.000000e+00> : vector<8x128xf32>
    %12 = tpu.matmul %10, %11, %cst {dimension_numbers = #tpu.dot_dimension_numbers<[1], [0], [0], [1], [0, 0, 1, 1], [], []>} : vector<8x48xbf16>, vector<48x128xbf16>, vector<8x128xf32> -> vector<8x128xf32>
    %c0_11 = arith.constant 0 : index
    %c0_12 = arith.constant 0 : index
    %13 = vector.load %arg4[%c0_11, %c0_12] : memref<1x128xf32, #tpu.memory_space<vmem>>, vector<1x128xf32>
    %14 = vector.broadcast %13 : vector<1x128xf32> to vector<8x128xf32>
    %15 = arith.addf %12, %14 : vector<8x128xf32>
    %cst_13 = arith.constant 0.000000e+00 : f32
    %16 = vector.broadcast %cst_13 : f32 to vector<8x128xf32>
    %17 = arith.maximumf %15, %16 : vector<8x128xf32>
    %18 = arith.truncf %17 : vector<8x128xf32> to vector<8x128xbf16>
    %c0_14 = arith.constant 0 : index
    %c0_15 = arith.constant 0 : index
    %19 = vector.load %arg5[%c0_14, %c0_15] : memref<128x32xbf16, #tpu.memory_space<vmem>>, vector<128x32xbf16>
    %cst_16 = arith.constant dense<0.000000e+00> : vector<8x32xf32>
    %20 = tpu.matmul %18, %19, %cst_16 {dimension_numbers = #tpu.dot_dimension_numbers<[1], [0], [0], [1], [0, 0, 1, 1], [], []>} : vector<8x128xbf16>, vector<128x32xbf16>, vector<8x32xf32> -> vector<8x32xf32>
    %c0_17 = arith.constant 0 : index
    %c0_18 = arith.constant 0 : index
    %21 = vector.load %arg6[%c0_17, %c0_18] : memref<1x32xf32, #tpu.memory_space<vmem>>, vector<1x32xf32>
    %22 = vector.broadcast %21 : vector<1x32xf32> to vector<8x32xf32>
    %23 = arith.addf %20, %22 : vector<8x32xf32>
    %cst_19 = arith.constant 0.000000e+00 : f32
    %24 = vector.broadcast %cst_19 : f32 to vector<8x32xf32>
    %25 = arith.maximumf %23, %24 : vector<8x32xf32>
    %26 = arith.truncf %25 : vector<8x32xf32> to vector<8x32xbf16>
    %c0_20 = arith.constant 0 : index
    %c0_21 = arith.constant 0 : index
    %27 = vector.load %arg7[%c0_20, %c0_21] : memref<32x4xbf16, #tpu.memory_space<vmem>>, vector<32x4xbf16>
    %cst_22 = arith.constant dense<0.000000e+00> : vector<8x4xf32>
    %28 = tpu.matmul %26, %27, %cst_22 {dimension_numbers = #tpu.dot_dimension_numbers<[1], [0], [0], [1], [0, 0, 1, 1], [], []>} : vector<8x32xbf16>, vector<32x4xbf16>, vector<8x4xf32> -> vector<8x4xf32>
    %c0_23 = arith.constant 0 : index
    %c0_24 = arith.constant 0 : index
    %29 = vector.load %arg8[%c0_23, %c0_24] : memref<1x4xf32, #tpu.memory_space<vmem>>, vector<1x4xf32>
    %30 = vector.broadcast %29 : vector<1x4xf32> to vector<8x4xf32>
    %31 = arith.addf %28, %30 : vector<8x4xf32>
    %c0_25 = arith.constant 0 : index
    %c0_26 = arith.constant 0 : index
    %32 = vector.load %arg9[%c0_25, %c0_26] : memref<8x4xf32, #tpu.memory_space<vmem>>, vector<8x4xf32>
    tpu.vector_store %arg9[%c0_25, %c0_26], %31 {strides = array<i32>} : memref<8x4xf32, #tpu.memory_space<vmem>>, vector<8x4xf32>,
    return
  }
  func.func @transform_0(%arg0: i32) -> (i32, i32) {
    %c0_i32 = arith.constant 0 : i32
    %c0_i32_0 = arith.constant 0 : i32
    return %arg0, %c0_i32 : i32, i32
  }
  func.func @transform_1(%arg0: i32) -> (i32, i32) {
    %c0_i32 = arith.constant 0 : i32
    %c0_i32_0 = arith.constant 0 : i32
    return %arg0, %c0_i32 : i32, i32
  }
  func.func @transform_2(%arg0: i32) -> (i32, i32) {
    %c0_i32 = arith.constant 0 : i32
    %c0_i32_0 = arith.constant 0 : i32
    %c0_i32_1 = arith.constant 0 : i32
    return %c0_i32, %c0_i32_0 : i32, i32
  }
  func.func @transform_3(%arg0: i32) -> (i32, i32) {
    %c0_i32 = arith.constant 0 : i32
    %c0_i32_0 = arith.constant 0 : i32
    %c0_i32_1 = arith.constant 0 : i32
    return %c0_i32, %c0_i32_0 : i32, i32
  }
  func.func @transform_4(%arg0: i32) -> (i32, i32) {
    %c0_i32 = arith.constant 0 : i32
    %c0_i32_0 = arith.constant 0 : i32
    %c0_i32_1 = arith.constant 0 : i32
    return %c0_i32, %c0_i32_0 : i32, i32
  }
  func.func @transform_5(%arg0: i32) -> (i32, i32) {
    %c0_i32 = arith.constant 0 : i32
    %c0_i32_0 = arith.constant 0 : i32
    %c0_i32_1 = arith.constant 0 : i32
    return %c0_i32, %c0_i32_0 : i32, i32
  }
  func.func @transform_6(%arg0: i32) -> (i32, i32) {
    %c0_i32 = arith.constant 0 : i32
    %c0_i32_0 = arith.constant 0 : i32
    %c0_i32_1 = arith.constant 0 : i32
    return %c0_i32, %c0_i32_0 : i32, i32
  }
  func.func @transform_7(%arg0: i32) -> (i32, i32) {
    %c0_i32 = arith.constant 0 : i32
    %c0_i32_0 = arith.constant 0 : i32
    %c0_i32_1 = arith.constant 0 : i32
    return %c0_i32, %c0_i32_0 : i32, i32
  }
  func.func @transform_8(%arg0: i32) -> (i32, i32) {
    %c0_i32 = arith.constant 0 : i32
    %c0_i32_0 = arith.constant 0 : i32
    return %arg0, %c0_i32 : i32, i32
  }
}

</mosaic_0001>

<llo_original>
// kernel: tpu_custom_call.1
$region0: #{tpu_custom_call.1}
  #allocation0 [shape = 'u32[]', space=smem, size = 0x4, offset = 0x4, fixed_abs, tag = 'smem constant byte address 0x4 - core index']
  #allocation1 [shape = 'u32[144,128]{1,0:T(1,128)}', space=vmem, size = 0x12000, scoped, tag = 'internal scratch']
  #allocation2 [shape = 'bf16[8,48]{1,0:T(8,128)(2,1)}', space=vmem, size = 0x800, scoped, tag = 'scratch operand']
  %s0 = inlined_call_operand.vmem [shape: f32[8,16], index: 0, kind: input, shape index: {}]
  %s1 = inlined_call_operand.vmem [shape: f32[8,16], index: 1, kind: input, shape index: {}]
  %s2 = inlined_call_operand.vmem [shape: bf16[48,128], index: 2, kind: input, shape index: {}]
  %s3 = inlined_call_operand.vmem [shape: f32[1,128], index: 3, kind: input, shape index: {}]
  %s4 = inlined_call_operand.vmem [shape: bf16[128,32], index: 4, kind: input, shape index: {}]
  %s5 = inlined_call_operand.vmem [shape: f32[1,32], index: 5, kind: input, shape index: {}]
  %s6 = inlined_call_operand.vmem [shape: bf16[32,4], index: 6, kind: input, shape index: {}]
  %s7 = inlined_call_operand.vmem [shape: f32[1,4], index: 7, kind: input, shape index: {}]
  %s8 = inlined_call_operand.vmem [shape: f32[8,4], index: 8, kind: output, shape index: {}]
  %s9 = sld [smem:[#allocation0]]
  $region42: #{tpu_custom_call.1} parent=0
    _
  %s11 = ssub.s32 1, %s9
  %s12 = scalar_select 0, %s11, %s9
  // Predicated region
  $region2: #{tpu_custom_call.1} parent=0 // pred_check
    _
  $region3: #{tpu_custom_call.1} parent=0 // pred_check_branch
    %14 = sbr.rel (0) target = $region5
  $region4: #{tpu_custom_call.1} parent=0 // pred_region
    _
  $region5: #{tpu_custom_call.1} parent=0 // pred_fallthru
    _
  // Predicated region
  $region6: #{tpu_custom_call.1} parent=0 // pred_check
    _
  $region7: #{tpu_custom_call.1} parent=0 // pred_check_branch
    %16 = sbr.rel (0) target = $region9
  $region8: #{tpu_custom_call.1} parent=0 // pred_region
    _
  $region9: #{tpu_custom_call.1} parent=0 // pred_fallthru
    _
  // Predicated region
  $region10: #{tpu_custom_call.1} parent=0 // pred_check
    _
  $region11: #{tpu_custom_call.1} parent=0 // pred_check_branch
    %18 = sbr.rel (0) target = $region13
  $region12: #{tpu_custom_call.1} parent=0 // pred_region
    _
  $region13: #{tpu_custom_call.1} parent=0 // pred_fallthru
    _
  // Predicated region
  $region14: #{tpu_custom_call.1} parent=0 // pred_check
    _
  $region15: #{tpu_custom_call.1} parent=0 // pred_check_branch
    %20 = sbr.rel (0) target = $region17
  $region16: #{tpu_custom_call.1} parent=0 // pred_region
    _
  $region17: #{tpu_custom_call.1} parent=0 // pred_fallthru
    _
  // Predicated region
  $region18: #{tpu_custom_call.1} parent=0 // pred_check
    _
  $region19: #{tpu_custom_call.1} parent=0 // pred_check_branch
    %22 = sbr.rel (0) target = $region21
  $region20: #{tpu_custom_call.1} parent=0 // pred_region
    _
  $region21: #{tpu_custom_call.1} parent=0 // pred_fallthru
    _
  // Predicated region
  $region22: #{tpu_custom_call.1} parent=0 // pred_check
    _
  $region23: #{tpu_custom_call.1} parent=0 // pred_check_branch
    %24 = sbr.rel (0) target = $region25
  $region24: #{tpu_custom_call.1} parent=0 // pred_region
    _
  $region25: #{tpu_custom_call.1} parent=0 // pred_fallthru
    _
  // Predicated region
  $region26: #{tpu_custom_call.1} parent=0 // pred_check
    _
  $region27: #{tpu_custom_call.1} parent=0 // pred_check_branch
    %26 = sbr.rel (0) target = $region29
  $region28: #{tpu_custom_call.1} parent=0 // pred_region
    _
  $region29: #{tpu_custom_call.1} parent=0 // pred_fallthru
    _
  // Predicated region
  $region30: #{tpu_custom_call.1} parent=0 // pred_check
    _
  $region31: #{tpu_custom_call.1} parent=0 // pred_check_branch
    %28 = sbr.rel (0) target = $region33
  $region32: #{tpu_custom_call.1} parent=0 // pred_region
    _
  $region33: #{tpu_custom_call.1} parent=0 // pred_fallthru
    _
  %v30 = vld [vmem:[%s0] sm:$0xff]
  %v31 = vld [vmem:[%s1] sm:$0xff]
  %v32 = vpack.c.bf16 %v30, %v30
  %vm33 = vcmask 125952
  %34 = vst.msk [vmem:[#allocation2] sm:$0xf] %vm33, %v32
  %v35 = vsub.f32 %v31, %v30
  %v36 = vand.u32 2147483647, %v35
  %v37 = vpack.c.bf16 %v36, %v36
  %v39 = vunpack.c.l.b16 %v37
  %v40 = vpack.c.b16 %v39, %v39
  %41 = vrot.lane.b32.xlu0 %v40, 16
  %v42 = vpop.permute.xlu0 %41
  %vm44 = vcmask 257152
  %45 = vst.msk [vmem:[#allocation2] sm:$0xf] %vm44, %v42
  %v46 = vpack.c.bf16 %v31, %v31
  %v48 = vunpack.c.l.b16 %v46
  %v49 = vpack.c.b16 %v48, %v48
  %50 = vrot.lane.b32.xlu0 %v49, 32
  %v51 = vpop.permute.xlu0 %50
  %vm53 = vcmask 388352
  %54 = vst.msk [vmem:[#allocation2] sm:$0xf] %vm53, %v51
  %v55 = vld [vmem:[#allocation2] sm:$0xf]
  %v56 = vld [vmem:[%s2] sm:$0xf]
  %v57 = vld [vmem:[%s2 + $0x4] sm:$0xf]
  %v58 = vld [vmem:[%s2 + $0x8] sm:$0xf]
  %v59 = vld [vmem:[%s2 + $0xc] sm:$0xf]
  %v60 = vld [vmem:[%s2 + $0x10] sm:$0xf]
  %v61 = vld [vmem:[%s2 + $0x14] sm:$0xf]
  %v62 = vld [vmem:[%s3] sm:$0x1]
  %v64 = vlaneseq
  %v65 = vshrl.u32 %v64, 7
  %v66 = vsub.s32 0, %v65
  %v67 = vrot.slane %v62, %v66
  %v75 = vunpack.c.l.b16 %v56
  %v76 = vunpack.c.l.b16 %v57
  %v77 = vunpack.c.l.b16 %v58
  %v78 = vunpack.c.l.b16 %v59
  %v79 = vunpack.c.l.b16 %v60
  %v80 = vunpack.c.l.b16 %v61
  %v81 = vpack.c.b16 %v76, %v75
  %v82 = vpack.c.b16 %v78, %v77
  %v83 = vpack.c.b16 %v80, %v79
  %vm87 = vcmask 392192
  %v89 = vsel %vm87, %v55, 0
  %91 = vmatprep.subr.bf16.mxu0 0
  %92 = vmatpush1.bf16.msra.mxu0 %v81
  %93 = vmatprep.subr.bf16.mxu0 0
  %94 = vmatpush1.bf16.msra.mxu0 %v82
  %95 = vmatprep.subr.bf16.mxu0 0
  %96 = vmatpush1.bf16.msra.mxu0 %v83
  %97 = vmatprep.subr.bf16.mxu0 0
  %98 = vmatpush1.bf16.msra.mxu0 0
  %99 = vmatprep.subr.bf16.mxu0 0
  %100 = vmatpush1.bf16.msra.mxu0 0
  %101 = vmatprep.subr.bf16.mxu0 0
  %102 = vmatpush1.bf16.msra.mxu0 0
  %103 = vmatprep.subr.bf16.mxu0 0
  %104 = vmatpush1.bf16.msra.mxu0 0
  %105 = vmatprep.subr.bf16.mxu0 0
  %106 = vmatpush1.bf16.msra.mxu0 0
  %107 = vmatprep.subr.bf16.mxu0 0
  %108 = vmatpush1.bf16.msra.mxu0 0
  %109 = vmatprep.subr.bf16.mxu0 0
  %110 = vmatpush1.bf16.msra.mxu0 0
  %111 = vmatprep.subr.bf16.mxu0 0
  %112 = vmatpush1.bf16.msra.mxu0 0
  %113 = vmatprep.subr.bf16.mxu0 0
  %114 = vmatpush1.bf16.msra.mxu0 0
  %115 = vmatprep.subr.bf16.mxu0 0
  %116 = vmatpush1.bf16.msra.mxu0 0
  %117 = vmatprep.subr.bf16.mxu0 0
  %118 = vmatpush1.bf16.msra.mxu0 0
  %119 = vmatprep.subr.bf16.mxu0 0
  %120 = vmatpush1.bf16.msra.mxu0 0
  %121 = vmatprep.subr.bf16.mxu0 0
  %122 = vmatpush1.bf16.msra.mxu0 0
  %123 = vmatprep.mubr.bf16.mxu0 0
  %124 = vmatmul.mubr.bf16.gmra.mrb[0].mxu0 %v89
  %v125 = vpop.f32.mrb[0].mxu0
  %v126 = vadd.f32 %v67, %v125
  %v127 = vpop.f32.mrb[0].mxu0
  %v128 = vpop.f32.mrb[0].mxu0
  %v129 = vpop.f32.mrb[0].mxu0
  %130 = vdwg.mxu0
  %v131 = vmax.f32 %v126, 0.0
  %v132 = vpack.c.bf16 %v131, %v131
  %v133 = vld [vmem:[%s4] sm:$0xf]
  %v134 = vld [vmem:[%s4 + $0x4] sm:$0xf]
  %v135 = vld [vmem:[%s4 + $0x8] sm:$0xf]
  %v136 = vld [vmem:[%s4 + $0xc] sm:$0xf]
  %v137 = vld [vmem:[%s4 + $0x10] sm:$0xf]
  %v138 = vld [vmem:[%s4 + $0x14] sm:$0xf]
  %v139 = vld [vmem:[%s4 + $0x18] sm:$0xf]
  %v140 = vld [vmem:[%s4 + $0x1c] sm:$0xf]
  %v141 = vld [vmem:[%s4 + $0x20] sm:$0xf]
  %v142 = vld [vmem:[%s4 + $0x24] sm:$0xf]
  %v143 = vld [vmem:[%s4 + $0x28] sm:$0xf]
  %v144 = vld [vmem:[%s4 + $0x2c] sm:$0xf]
  %v145 = vld [vmem:[%s4 + $0x30] sm:$0xf]
  %v146 = vld [vmem:[%s4 + $0x34] sm:$0xf]
  %v147 = vld [vmem:[%s4 + $0x38] sm:$0xf]
  %v148 = vld [vmem:[%s4 + $0x3c] sm:$0xf]
  %v149 = vld [vmem:[%s5] sm:$0x1]
  %v151 = vlaneseq
  %v152 = vshrl.u32 %v151, 7
  %v153 = vsub.s32 0, %v152
  %v154 = vrot.slane %v149, %v153
  %v172 = vunpack.c.l.b16 %v133
  %v173 = vunpack.c.l.b16 %v134
  %v174 = vunpack.c.l.b16 %v135
  %v175 = vunpack.c.l.b16 %v136
  %v176 = vunpack.c.l.b16 %v137
  %v177 = vunpack.c.l.b16 %v138
  %v178 = vunpack.c.l.b16 %v139
  %v179 = vunpack.c.l.b16 %v140
  %v180 = vunpack.c.l.b16 %v141
  %v181 = vunpack.c.l.b16 %v142
  %v182 = vunpack.c.l.b16 %v143
  %v183 = vunpack.c.l.b16 %v144
  %v184 = vunpack.c.l.b16 %v145
  %v185 = vunpack.c.l.b16 %v146
  %v186 = vunpack.c.l.b16 %v147
  %v187 = vunpack.c.l.b16 %v148
  %v188 = vpack.c.b16 %v173, %v172
  %v189 = vpack.c.b16 %v175, %v174
  %v190 = vpack.c.b16 %v177, %v176
  %v191 = vpack.c.b16 %v179, %v178
  %v192 = vpack.c.b16 %v181, %v180
  %v193 = vpack.c.b16 %v183, %v182
  %v194 = vpack.c.b16 %v185, %v184
  %v195 = vpack.c.b16 %v187, %v186
  %204 = vmatprep.subr.bf16.mxu0 0
  %205 = vmatpush1.bf16.msra.mxu0 %v188
  %206 = vmatprep.subr.bf16.mxu0 0
  %207 = vmatpush1.bf16.msra.mxu0 %v189
  %208 = vmatprep.subr.bf16.mxu0 0
  %209 = vmatpush1.bf16.msra.mxu0 %v190
  %210 = vmatprep.subr.bf16.mxu0 0
  %211 = vmatpush1.bf16.msra.mxu0 %v191
  %212 = vmatprep.subr.bf16.mxu0 0
  %213 = vmatpush1.bf16.msra.mxu0 %v192
  %214 = vmatprep.subr.bf16.mxu0 0
  %215 = vmatpush1.bf16.msra.mxu0 %v193
  %216 = vmatprep.subr.bf16.mxu0 0
  %217 = vmatpush1.bf16.msra.mxu0 %v194
  %218 = vmatprep.subr.bf16.mxu0 0
  %219 = vmatpush1.bf16.msra.mxu0 %v195
  %220 = vmatprep.subr.bf16.mxu0 0
  %221 = vmatpush1.bf16.msra.mxu0 0
  %222 = vmatprep.subr.bf16.mxu0 0
  %223 = vmatpush1.bf16.msra.mxu0 0
  %224 = vmatprep.subr.bf16.mxu0 0
  %225 = vmatpush1.bf16.msra.mxu0 0
  %226 = vmatprep.subr.bf16.mxu0 0
  %227 = vmatpush1.bf16.msra.mxu0 0
  %228 = vmatprep.subr.bf16.mxu0 0
  %229 = vmatpush1.bf16.msra.mxu0 0
  %230 = vmatprep.subr.bf16.mxu0 0
  %231 = vmatpush1.bf16.msra.mxu0 0
  %232 = vmatprep.subr.bf16.mxu0 0
  %233 = vmatpush1.bf16.msra.mxu0 0
  %234 = vmatprep.subr.bf16.mxu0 0
  %235 = vmatpush1.bf16.msra.mxu0 0
  %236 = vmatprep.mubr.bf16.mxu0 0
  %237 = vmatmul.mubr.bf16.gmra.mrb[0].mxu0 %v132
  %v238 = vpop.f32.mrb[0].mxu0
  %v239 = vadd.f32 %v154, %v238
  %v240 = vpop.f32.mrb[0].mxu0
  %v241 = vpop.f32.mrb[0].mxu0
  %v242 = vpop.f32.mrb[0].mxu0
  %243 = vdwg.mxu0
  %v244 = vmax.f32 %v239, 0.0
  %v245 = vpack.c.bf16 %v244, %v244
  %v246 = vld [vmem:[%s6] sm:$0xf]
  %v247 = vld [vmem:[%s6 + $0x4] sm:$0xf]
  %v248 = vld [vmem:[%s6 + $0x8] sm:$0xf]
  %v249 = vld [vmem:[%s6 + $0xc] sm:$0xf]
  %v250 = vld [vmem:[%s7] sm:$0x1]
  %v252 = vlaneseq
  %v253 = vshrl.u32 %v252, 7
  %v254 = vsub.s32 0, %v253
  %v255 = vrot.slane %v250, %v254
  %v261 = vunpack.c.l.b16 %v246
  %v262 = vunpack.c.l.b16 %v247
  %v263 = vunpack.c.l.b16 %v248
  %v264 = vunpack.c.l.b16 %v249
  %v265 = vpack.c.b16 %v262, %v261
  %v266 = vpack.c.b16 %v264, %v263
  %vm269 = vcmask 261120
  %v271 = vsel %vm269, %v245, 0
  %273 = vmatprep.subr.bf16.mxu0 0
  %274 = vmatpush1.bf16.msra.mxu0 %v265
  %275 = vmatprep.subr.bf16.mxu0 0
  %276 = vmatpush1.bf16.msra.mxu0 %v266
  %277 = vmatprep.subr.bf16.mxu0 0
  %278 = vmatpush1.bf16.msra.mxu0 0
  %279 = vmatprep.subr.bf16.mxu0 0
  %280 = vmatpush1.bf16.msra.mxu0 0
  %281 = vmatprep.subr.bf16.mxu0 0
  %282 = vmatpush1.bf16.msra.mxu0 0
  %283 = vmatprep.subr.bf16.mxu0 0
  %284 = vmatpush1.bf16.msra.mxu0 0
  %285 = vmatprep.subr.bf16.mxu0 0
  %286 = vmatpush1.bf16.msra.mxu0 0
  %287 = vmatprep.subr.bf16.mxu0 0
  %288 = vmatpush1.bf16.msra.mxu0 0
  %289 = vmatprep.subr.bf16.mxu0 0
  %290 = vmatpush1.bf16.msra.mxu0 0
  %291 = vmatprep.subr.bf16.mxu0 0
  %292 = vmatpush1.bf16.msra.mxu0 0
  %293 = vmatprep.subr.bf16.mxu0 0
  %294 = vmatpush1.bf16.msra.mxu0 0
  %295 = vmatprep.subr.bf16.mxu0 0
  %296 = vmatpush1.bf16.msra.mxu0 0
  %297 = vmatprep.subr.bf16.mxu0 0
  %298 = vmatpush1.bf16.msra.mxu0 0
  %299 = vmatprep.subr.bf16.mxu0 0
  %300 = vmatpush1.bf16.msra.mxu0 0
  %301 = vmatprep.subr.bf16.mxu0 0
  %302 = vmatpush1.bf16.msra.mxu0 0
  %303 = vmatprep.subr.bf16.mxu0 0
  %304 = vmatpush1.bf16.msra.mxu0 0
  %305 = vmatprep.mubr.bf16.mxu0 0
  %306 = vmatmul.mubr.bf16.gmra.mrb[0].mxu0 %v271
  %v307 = vpop.f32.mrb[0].mxu0
  %v308 = vadd.f32 %v255, %v307
  %v309 = vpop.f32.mrb[0].mxu0
  %v310 = vpop.f32.mrb[0].mxu0
  %v311 = vpop.f32.mrb[0].mxu0
  %312 = vdwg.mxu0
  %vm313 = vcmask 31744
  %314 = vst.msk [vmem:[%s8] sm:$0xff] %vm313, %v308
  // Predicated region
  $region34: #{tpu_custom_call.1} parent=0 // pred_check
    _
  $region35: #{tpu_custom_call.1} parent=0 // pred_check_branch
    %316 = sbr.rel (0) target = $region37
  $region36: #{tpu_custom_call.1} parent=0 // pred_region
    _
  $region37: #{tpu_custom_call.1} parent=0 // pred_fallthru
    _
  // Predicated region
  $region38: #{tpu_custom_call.1} parent=0 // pred_check
    _
  $region39: #{tpu_custom_call.1} parent=0 // pred_check_branch
    %318 = sbr.rel (0) target = $region41
  $region40: #{tpu_custom_call.1} parent=0 // pred_region
    _
  $region41: #{tpu_custom_call.1} parent=0 // pred_fallthru
    _

</llo_original>
